<compile_context>
chip_gen: v5e
topology: v5e:2x2
jax: 0.10.0
libtpu: 0.0.40
codegen_flags: <defaults>
</compile_context>

<pallas_src>
import numpy as np
import jax
import jax.numpy as jnp
from jax.experimental import pallas as pl
from jax.experimental.pallas import tpu as pltpu

_LANE = 128


def _store_col_as_row(col, loss_ref):
    """Relayout a (tn, 1) column of per-row losses into the (1, tn) lane-dense
    output ref, 128 sublane-rows at a time (diagonal mask + sublane sum).
    All bounds are trace-time constants; tn is either <= 128 or a multiple of
    128, so a single hoisted mask serves every chunk."""
    tn = col.shape[0]
    chunk = min(_LANE, tn)
    rid = jax.lax.broadcasted_iota(jnp.int32, (chunk, chunk), 0)
    cid = jax.lax.broadcasted_iota(jnp.int32, (chunk, chunk), 1)
    diag = rid == cid                                  # hoisted, reused per chunk
    for s in range(0, tn, chunk):                      # static (trace-time) loop
        blk = col[s:s + chunk, :]                                      # (chunk, 1)
        row = jnp.sum(jnp.where(diag, blk, 0.0),
                      axis=0, keepdims=True)                           # (1, chunk)
        loss_ref[:, s:s + chunk] = row                                 # aligned vst


def vs_loss_kernel(x_ref, tgt_ref, inv_delta_ref, iota_ref, loss_ref):
    # x_ref: (TN, C) f32, tgt_ref: (TN, 1) i32,
    # inv_delta_ref / iota_ref: (1, C) f32 (VMEM-resident), loss_ref: (1, TN) f32.
    out = x_ref[...] * inv_delta_ref[...] + iota_ref[...]          # VPU elementwise

    # numerically stable logsumexp over the class (lane) axis
    m = jnp.max(out, axis=-1, keepdims=True)                       # XLU reduce
    lse = m + jnp.log(jnp.sum(jnp.exp(out - m), axis=-1, keepdims=True))

    # gather out[i, target_i] with a one-hot lane mask
    # TODO(synk): targets assumed in [0, C); out-of-range rows silently get
    # tgt_logit = 0 (PyTorch's cross_entropy would raise instead).
    lane = jax.lax.broadcasted_iota(jnp.int32, out.shape, 1)
    tgt_logit = jnp.sum(jnp.where(lane == tgt_ref[...], out, 0.0),
                        axis=-1, keepdims=True)                    # (TN, 1)

    _store_col_as_row(lse - tgt_logit, loss_ref)                   # lane-dense out


def _pick_tile_n(n, c, max_tile_n, x_tile_budget_bytes):
    """Pick the batch tile: full array for small N, else the largest
    multiple-of-128 row count that (a) keeps the lane-padded x tile within the
    per-buffer VMEM budget, (b) stays <= max_tile_n, and (c) keeps batch
    padding waste small by fixing the grid-step count first."""
    if n <= _LANE:
        return n
    c_pad = pl.cdiv(c, _LANE) * _LANE                  # lane-padded storage width
    cap = (x_tile_budget_bytes // (c_pad * 4)) // _LANE * _LANE
    cap = max(_LANE, min(max_tile_n, cap))
    n128 = pl.cdiv(n, _LANE) * _LANE
    steps = pl.cdiv(n128, cap)
    tile = pl.cdiv(pl.cdiv(n128, steps), _LANE) * _LANE
    return min(tile, n128)


def vs_loss(x, target, delta_list, iota_list, *, max_tile_n=2048,
            x_tile_budget_bytes=2 * 1024 * 1024):
    """Per-sample VS loss. x: (N, C) f32, target: (N,) int -> (N,) f32."""
    assert max_tile_n % _LANE == 0
    N, C = x.shape
    x = x.astype(jnp.float32)
    tgt2d = target.astype(jnp.int32).reshape(N, 1)
    inv_delta2d = (1.0 / delta_list.astype(jnp.float32)).reshape(1, C)
    iota2d = iota_list.astype(jnp.float32).reshape(1, C)

    tile_n = _pick_tile_n(N, C, max_tile_n, x_tile_budget_bytes)
    n_pad = pl.cdiv(N, tile_n) * tile_n
    if n_pad != N:
        x = jnp.pad(x, ((0, n_pad - N), (0, 0)))
        tgt2d = jnp.pad(tgt2d, ((0, n_pad - N), (0, 0)))   # pad targets = class 0

    out = pl.pallas_call(
        vs_loss_kernel,
        out_shape=jax.ShapeDtypeStruct((1, n_pad), jnp.float32),
        grid_spec=pltpu.PrefetchScalarGridSpec(
            num_scalar_prefetch=0,
            grid=(n_pad // tile_n,),
            in_specs=[
                pl.BlockSpec((tile_n, C), lambda i: (i, 0)),   # x tile
                pl.BlockSpec((tile_n, 1), lambda i: (i, 0)),   # target tile
                pl.BlockSpec((1, C), lambda i: (0, 0)),        # 1/Delta (resident)
                pl.BlockSpec((1, C), lambda i: (0, 0)),        # iota    (resident)
            ],
            out_specs=pl.BlockSpec((1, tile_n), lambda i: (0, i)),  # lane-dense
        ),
        compiler_params=pltpu.CompilerParams(
            dimension_semantics=("parallel",),
            vmem_limit_bytes=32 * 1024 * 1024),
    )(x, tgt2d, inv_delta2d, iota2d)
    return out[0, :N]


def make_vs_params(cls_num_list, gamma=0.3, tau=1.0):
    """Deterministic parameter setup mirroring VSLoss.__init__."""
    cls_num_list = np.asarray(cls_num_list, dtype=np.float64)
    cls_probs = cls_num_list / cls_num_list.sum()
    temp = (1.0 / cls_num_list) ** gamma
    temp = temp / np.min(temp)
    iota_list = tau * np.log(cls_probs)
    delta_list = temp
    return (jnp.asarray(delta_list, dtype=jnp.float32),
            jnp.asarray(iota_list, dtype=jnp.float32))


def vs_loss_ref(x, target, delta_list, iota_list):
    out = x / delta_list[None, :] + iota_list[None, :]
    lse = jax.scipy.special.logsumexp(out, axis=-1)
    tgt = jnp.take_along_axis(out, target[:, None].astype(jnp.int32),
                              axis=-1)[:, 0]
    return lse - tgt


if __name__ == "__main__":
    key = jax.random.PRNGKey(0)

    # Case sets: (cls_num_list, batch sizes).  Exercises the single-tile path,
    # the padded single-step path, the multi-chunk relayout, and the
    # multi-step grid path, each checked against the pure-JAX reference.
    cases = [
        ([100, 60, 40, 25, 15, 10, 8, 5, 3, 2], (16, 300, 1100)),   # 10 classes
        (list(range(200, 100, -1)), (2500,)),                        # 100 classes
    ]

    for cls_num_list, batches in cases:
        num_classes = len(cls_num_list)
        delta_list, iota_list = make_vs_params(cls_num_list, gamma=0.3, tau=1.0)
        for batch in batches:
            key, kx, kt = jax.random.split(key, 3)
            x = jax.random.normal(kx, (batch, num_classes), dtype=jnp.float32)
            target = jax.random.randint(kt, (batch,), 0, num_classes,
                                        dtype=jnp.int32)

            loss = vs_loss(x, target, delta_list, iota_list)
            jax.block_until_ready(loss)

            ref = vs_loss_ref(x, target, delta_list, iota_list)
            np.testing.assert_allclose(np.asarray(loss), np.asarray(ref),
                                       rtol=1e-5, atol=1e-5)

    print("KERNEL_OK")
</pallas_src>

<mosaic_0001>
module attributes {stable_mosaic.version = 11 : i64} {
  func.func @vs_loss_kernel(%arg0: i32, %arg1: memref<16x10xf32, #tpu.memory_space<vmem>>, %arg2: memref<16x1xi32, #tpu.memory_space<vmem>>, %arg3: memref<1x10xf32, #tpu.memory_space<vmem>>, %arg4: memref<1x10xf32, #tpu.memory_space<vmem>>, %arg5: memref<1x16xf32, #tpu.memory_space<vmem>>) attributes {dimension_semantics = [#tpu.dimension_semantics<parallel>], iteration_bounds = array<i64: 1>, scalar_prefetch = 0 : i64, scratch_operands = 0 : i64, tpu.core_type = #tpu.core_type<tc>, window_params = [{transform_indices = @transform_0, window_bounds = array<i64: 16, 10>}, {transform_indices = @transform_1, window_bounds = array<i64: 16, 1>}, {pipeline_mode = #tpu.pipeline_mode<synchronous>, transform_indices = @transform_2, window_bounds = array<i64: 1, 10>}, {pipeline_mode = #tpu.pipeline_mode<synchronous>, transform_indices = @transform_3, window_bounds = array<i64: 1, 10>}, {transform_indices = @transform_4, window_bounds = array<i64: 1, 16>}]} {
    %c0 = arith.constant 0 : index
    %c0_0 = arith.constant 0 : index
    %0 = vector.load %arg1[%c0, %c0_0] : memref<16x10xf32, #tpu.memory_space<vmem>>, vector<16x10xf32>
    %c0_1 = arith.constant 0 : index
    %c0_2 = arith.constant 0 : index
    %1 = vector.load %arg3[%c0_1, %c0_2] : memref<1x10xf32, #tpu.memory_space<vmem>>, vector<1x10xf32>
    %2 = vector.broadcast %1 : vector<1x10xf32> to vector<16x10xf32>
    %3 = arith.mulf %0, %2 : vector<16x10xf32>
    %c0_3 = arith.constant 0 : index
    %c0_4 = arith.constant 0 : index
    %4 = vector.load %arg4[%c0_3, %c0_4] : memref<1x10xf32, #tpu.memory_space<vmem>>, vector<1x10xf32>
    %5 = vector.broadcast %4 : vector<1x10xf32> to vector<16x10xf32>
    %6 = arith.addf %3, %5 : vector<16x10xf32>
    %cst = arith.constant dense<0xFF800000> : vector<16xf32>
    %7 = vector.multi_reduction <maximumf>, %6, %cst [1] : vector<16x10xf32> to vector<16xf32>
    %8 = vector.shape_cast %7 : vector<16xf32> to vector<16x1xf32>
    %9 = vector.broadcast %8 : vector<16x1xf32> to vector<16x10xf32>
    %10 = arith.subf %6, %9 : vector<16x10xf32>
    %11 = math.exp %10 : vector<16x10xf32>
    %cst_5 = arith.constant dense<0.000000e+00> : vector<16xf32>
    %12 = vector.multi_reduction <add>, %11, %cst_5 [1] : vector<16x10xf32> to vector<16xf32>
    %13 = vector.shape_cast %12 : vector<16xf32> to vector<16x1xf32>
    %14 = math.log %13 : vector<16x1xf32>
    %15 = arith.addf %8, %14 : vector<16x1xf32>
    %16 = tpu.iota {dimensions = array<i32: 1>} : vector<16x10xi32>
    %c0_6 = arith.constant 0 : index
    %c0_7 = arith.constant 0 : index
    %17 = vector.load %arg2[%c0_6, %c0_7] : memref<16x1xi32, #tpu.memory_space<vmem>>, vector<16x1xi32>
    %18 = vector.broadcast %17 : vector<16x1xi32> to vector<16x10xi32>
    %19 = arith.cmpi eq, %16, %18 : vector<16x10xi32>
    %cst_8 = arith.constant 0.000000e+00 : f32
    %20 = vector.broadcast %cst_8 : f32 to vector<16x10xf32>
    %21 = arith.select %19, %6, %20 : vector<16x10xi1>, vector<16x10xf32>
    %cst_9 = arith.constant dense<0.000000e+00> : vector<16xf32>
    %22 = vector.multi_reduction <add>, %21, %cst_9 [1] : vector<16x10xf32> to vector<16xf32>
    %23 = vector.shape_cast %22 : vector<16xf32> to vector<16x1xf32>
    %24 = arith.subf %15, %23 : vector<16x1xf32>
    %25 = tpu.iota {dimensions = array<i32: 0>} : vector<16x16xi32>
    %26 = tpu.iota {dimensions = array<i32: 1>} : vector<16x16xi32>
    %27 = arith.cmpi eq, %25, %26 : vector<16x16xi32>
    %cst_10 = arith.constant 0.000000e+00 : f32
    %28 = vector.shape_cast %24 : vector<16x1xf32> to vector<16x1xf32>
    %29 = vector.broadcast %28 : vector<16x1xf32> to vector<16x16xf32>
    %30 = vector.broadcast %cst_10 : f32 to vector<16x16xf32>
    %31 = arith.select %27, %29, %30 : vector<16x16xi1>, vector<16x16xf32>
    %cst_11 = arith.constant dense<0.000000e+00> : vector<16xf32>
    %32 = vector.multi_reduction <add>, %31, %cst_11 [0] : vector<16x16xf32> to vector<16xf32>
    %33 = vector.shape_cast %32 : vector<16xf32> to vector<1x16xf32>
    %c0_12 = arith.constant 0 : index
    %c0_13 = arith.constant 0 : index
    %34 = vector.load %arg5[%c0_12, %c0_13] : memref<1x16xf32, #tpu.memory_space<vmem>>, vector<1x16xf32>
    tpu.vector_store %arg5[%c0_12, %c0_13], %33 {strides = array<i32>} : memref<1x16xf32, #tpu.memory_space<vmem>>, vector<1x16xf32>,
    return
  }
  func.func @transform_0(%arg0: i32) -> (i32, i32) {
    %c0_i32 = arith.constant 0 : i32
    %c0_i32_0 = arith.constant 0 : i32
    return %arg0, %c0_i32 : i32, i32
  }
  func.func @transform_1(%arg0: i32) -> (i32, i32) {
    %c0_i32 = arith.constant 0 : i32
    %c0_i32_0 = arith.constant 0 : i32
    return %arg0, %c0_i32 : i32, i32
  }
  func.func @transform_2(%arg0: i32) -> (i32, i32) {
    %c0_i32 = arith.constant 0 : i32
    %c0_i32_0 = arith.constant 0 : i32
    %c0_i32_1 = arith.constant 0 : i32
    return %c0_i32, %c0_i32_0 : i32, i32
  }
  func.func @transform_3(%arg0: i32) -> (i32, i32) {
    %c0_i32 = arith.constant 0 : i32
    %c0_i32_0 = arith.constant 0 : i32
    %c0_i32_1 = arith.constant 0 : i32
    return %c0_i32, %c0_i32_0 : i32, i32
  }
  func.func @transform_4(%arg0: i32) -> (i32, i32) {
    %c0_i32 = arith.constant 0 : i32
    %c0_i32_0 = arith.constant 0 : i32
    return %c0_i32, %arg0 : i32, i32
  }
}

</mosaic_0001>

<llo_original>
// kernel: tpu_custom_call.1
$region0: #{tpu_custom_call.1}
  #allocation0 [shape = 'u32[]', space=smem, size = 0x4, offset = 0x4, fixed_abs, tag = 'smem constant byte address 0x4 - core index']
  #allocation1 [shape = 'u32[72,128]{1,0:T(1,128)}', space=vmem, size = 0x9000, scoped, tag = 'internal scratch']
  %s0 = inlined_call_operand.vmem [shape: f32[16,10], index: 0, kind: input, shape index: {}]
  %s1 = inlined_call_operand.vmem [shape: s32[16,1], index: 1, kind: input, shape index: {}]
  %s2 = inlined_call_operand.vmem [shape: f32[1,10], index: 2, kind: input, shape index: {}]
  %s3 = inlined_call_operand.vmem [shape: f32[1,10], index: 3, kind: input, shape index: {}]
  %s4 = inlined_call_operand.hbm [shape: f32[1,16], index: 4, kind: output, shape index: {}]
  %s5 = sld [smem:[#allocation0]]
  $region26: #{tpu_custom_call.1} parent=0
    _
  %s7 = ssub.s32 1, %s5
  %s8 = scalar_select 0, %s7, %s5
  $region1: #{tpu_custom_call.1} parent=0
    #allocation2 [shape = 'u8[512]{0}', space=vmem, size = 0x400, scoped, tag = 'output window, operand 0, single buffered']
    #allocation3 [shape = 's32[1]{0}', space=sflag, size = 0x4, scoped, tag = 'scoped memory for tpu_custom_call.1']
    %9 = vsyncpa [#allocation3], 0
    // Predicated region
    $region2: #{tpu_custom_call.1} parent=1 // pred_check
      _
    $region3: #{tpu_custom_call.1} parent=1 // pred_check_branch
      %11 = sbr.rel (0) target = $region5
    $region4: #{tpu_custom_call.1} parent=1 // pred_region
      _
    $region5: #{tpu_custom_call.1} parent=1 // pred_fallthru
      _
    // Predicated region
    $region6: #{tpu_custom_call.1} parent=1 // pred_check
      _
    $region7: #{tpu_custom_call.1} parent=1 // pred_check_branch
      %13 = sbr.rel (0) target = $region9
    $region8: #{tpu_custom_call.1} parent=1 // pred_region
      _
    $region9: #{tpu_custom_call.1} parent=1 // pred_fallthru
      _
    // Predicated region
    $region10: #{tpu_custom_call.1} parent=1 // pred_check
      _
    $region11: #{tpu_custom_call.1} parent=1 // pred_check_branch
      %15 = sbr.rel (0) target = $region13
    $region12: #{tpu_custom_call.1} parent=1 // pred_region
      _
    $region13: #{tpu_custom_call.1} parent=1 // pred_fallthru
      _
    // Predicated region
    $region14: #{tpu_custom_call.1} parent=1 // pred_check
      _
    $region15: #{tpu_custom_call.1} parent=1 // pred_check_branch
      %17 = sbr.rel (0) target = $region17
    $region16: #{tpu_custom_call.1} parent=1 // pred_region
      _
    $region17: #{tpu_custom_call.1} parent=1 // pred_fallthru
      _
    %v18 = vld [vmem:[%s0] sm:$0xff]
    %v19 = vld [vmem:[%s0 + $0x8] sm:$0xff]
    %v20 = vld [vmem:[%s2] sm:$0x1]
    %v22 = vperm.slane %v20, 0
    %v24 = vmul.f32 %v18, %v22
    %v25 = vmul.f32 %v19, %v22
    %v26 = vld [vmem:[%s3] sm:$0x1]
    %v28 = vperm.slane %v26, 0
    %v30 = vadd.f32 %v24, %v28
    %v31 = vadd.f32 %v25, %v28
    %vm32 = vcmask 80896
    %v33 = vsel %vm32, %v30, -inf
    %34 = vmax.xlane.f32.xlu0 %v33
    %v35 = vpop.xlane.xlu0 %34
    %v36 = vsel %vm32, %v31, -inf
    %37 = vmax.xlane.f32.xlu0 %v36
    %v38 = vpop.xlane.xlu0 %37
    %v39 = vsub.f32 %v30, %v35
    %v40 = vsub.f32 %v31, %v38
    %v41 = vmul.f32 %v39, 1.442695
    %v42 = vpow.pop %v41
    %v43 = vmul.f32 %v40, 1.442695
    %v44 = vpow.pop %v43
    %v45 = vsel %vm32, %v42, 0.0
    %46 = vadd.xlane.f32.xlu0 %v45
    %v47 = vpop.xlane.xlu0 %46
    %v48 = vsel %vm32, %v44, 0.0
    %49 = vadd.xlane.f32.xlu0 %v48
    %v50 = vpop.xlane.xlu0 %49
    %v51 = vlog2.pop %v47
    %v52 = vmul.f32 %v51, 0.6931472
    %v53 = vlog2.pop %v50
    %v54 = vmul.f32 %v53, 0.6931472
    %v55 = vadd.f32 %v35, %v52
    %v56 = vadd.f32 %v38, %v54
    %v57 = vlaneseq
    %v58 = vand.u32 %v57, 127
    %v59 = vld [vmem:[%s1] sm:$0xff]
    %v60 = vld [vmem:[%s1 + $0x8] sm:$0xff]
    %61 = vset.pattern.permute.xlu0 0
    %62 = vperm.xlu0 %61, %v59
    %v63 = vpop.permute.xlu0 %62
    %64 = vset.pattern.permute.xlu0 0
    %65 = vperm.xlu0 %64, %v60
    %v66 = vpop.permute.xlu0 %65
    %vm67 = vcmp.eq.s32.totalorder %v58, %v63
    %vm68 = vcmp.eq.s32.totalorder %v58, %v66
    %v69 = vsel %vm67, %v30, 0.0
    %v70 = vsel %vm68, %v31, 0.0
    %v71 = vsel %vm32, %v69, 0.0
    %72 = vadd.xlane.f32.xlu0 %v71
    %v73 = vpop.xlane.xlu0 %72
    %v74 = vsel %vm32, %v70, 0.0
    %75 = vadd.xlane.f32.xlu0 %v74
    %v76 = vpop.xlane.xlu0 %75
    %v77 = vsub.f32 %v55, %v73
    %v78 = vsub.f32 %v56, %v76
    %v79 = vlaneseq
    %v80 = vshrl.u32 %v79, 7
    %v81 = vadd.s32 %v80, 8
    %vm82 = vcmp.eq.s32.totalorder %v80, %v58
    %vm83 = vcmp.eq.s32.totalorder %v81, %v58
    %v84 = vsel %vm82, %v77, 0.0
    %v85 = vsel %vm83, %v78, 0.0
    %vm86 = vcmask 130048
    %v87 = vsel %vm86, %v84, 0.0
    %v88 = vsel %vm86, %v85, 0.0
    %v89 = vadd.f32 %v87, %v88
    %v90 = vrot.slane %v89, 4
    %v91 = vadd.f32 %v89, %v90
    %v92 = vrot.slane %v91, 2
    %v93 = vadd.f32 %v91, %v92
    %v94 = vrot.slane %v93, 1
    %v95 = vadd.f32 %v93, %v94
    %vm96 = vcmask 122880
    %97 = vst.msk [vmem:[#allocation2] sm:$0x1] %vm96, %v95
    // Predicated region
    $region18: #{tpu_custom_call.1} parent=1 // pred_check
      _
    $region19: #{tpu_custom_call.1} parent=1 // pred_check_branch
      %99 = sbr.rel (0) target = $region21
    $region20: #{tpu_custom_call.1} parent=1 // pred_region
      %101 = vsyncadd [#allocation3], 0
      %s103 = sshll.u32 [#allocation2], 4
      %s104 = int_to_ptr.vmem [resolvable:$true] %s103
      %s105 = sshll.u32 %s4, 4
      %s106 = int_to_ptr.hbm [resolvable:$true] %s105
      %108 = dma.vmem_to_hbm [thread:$0]  %s104, 16, %s106, [#allocation3]
    $region21: #{tpu_custom_call.1} parent=1 // pred_fallthru
      _
    // Predicated region
    $region22: #{tpu_custom_call.1} parent=1 // pred_check
      _
    $region23: #{tpu_custom_call.1} parent=1 // pred_check_branch
      %110 = sbr.rel (0) target = $region25
    $region24: #{tpu_custom_call.1} parent=1 // pred_region
      %112 = dma.done [#allocation3], 16
    $region25: #{tpu_custom_call.1} parent=1 // pred_fallthru
      _
    %113 = vsyncpa [#allocation3], 1

</llo_original>
